<compile_context>
chip_gen: v5e
topology: v5e:2x2
jax: 0.10.0
libtpu: 0.0.40
codegen_flags: <defaults>
</compile_context>

<pallas_src>
import functools

import jax
import jax.numpy as jnp
from jax.experimental import pallas as pl
from jax.experimental.pallas import tpu as pltpu

_LN2 = 0.6931471805599453


def _logcosh_kernel(y_pred_ref, y_true_ref, out_ref, acc_ref, *, factor, inv_n):
    # Grid = (batch_tiles [parallel], feature_tiles [arbitrary, innermost]).
    j = pl.program_id(1)

    @pl.when(j == 0)
    def _init():
        acc_ref[...] = jnp.zeros_like(acc_ref)

    # Compute in f32 regardless of input dtype (accuracy; v5e has no bf16 VPU/EUP).
    err = y_true_ref[...].astype(jnp.float32) - y_pred_ref[...].astype(jnp.float32)
    a = jnp.abs(err)
    # Numerically stable log(cosh(x)) = |x| + log1p(exp(-2|x|)) - log(2).
    logcosh = a + jnp.log1p(jnp.exp(-2.0 * a)) - _LN2
    weighted = logcosh * (1.0 + factor * a)

    # Per-row partial sum for this feature tile, accumulated in f32.
    # (XLU cross-lane reduce; free under the DMA since the kernel is mem-bound.)
    acc_ref[...] += jnp.sum(weighted, axis=1, keepdims=True)

    @pl.when(j == pl.num_programs(1) - 1)
    def _finalize():
        out_ref[...] = (acc_ref[...] * inv_n).astype(out_ref.dtype)


def _round_up(x, m):
    return ((x + m - 1) // m) * m


def _choose_tiles(B, N, max_feature_tile, max_block_bytes):
    """Pick (tb, tn, b_pad, n_pad, gb, gn) honouring the (8, 128) block rule."""
    # --- feature (lane) axis: multiples of 128, minimal padding ---
    if N <= max_feature_tile:
        tn, n_pad, gn = N, N, 1                 # single full-extent block (any N)
    else:
        gn = -(-N // max_feature_tile)
        tn = _round_up(-(-N // gn), 128)        # balanced, 128-aligned tiles
        n_pad = gn * tn
    # --- batch (sublane) axis: ~max_block_bytes of f32 per input block ---
    target_rows = max(8, (max_block_bytes // 4) // max(tn, 1))
    max_tb = min(max(8, (target_rows // 8) * 8), 4096)
    if B <= max_tb:
        tb, b_pad, gb = B, B, 1                 # single full-extent block (any B)
    else:
        gb = -(-B // max_tb)
        tb = _round_up(-(-B // gb), 8)          # balanced, 8-aligned tiles
        b_pad = gb * tb
    return tb, tn, b_pad, n_pad, gb, gn


def logcosh_loss(
    y_pred: jax.Array,
    y_true: jax.Array,
    factor: float = 1.5,
    *,
    max_feature_tile: int = 2048,        # multiple of 128
    max_block_bytes: int = 2 * 1024 * 1024,
) -> jax.Array:
    assert y_pred.shape == y_true.shape and y_pred.ndim == 2
    B, N = y_pred.shape
    out_dtype = y_pred.dtype

    tb, tn, b_pad, n_pad, gb, gn = _choose_tiles(B, N, max_feature_tile, max_block_bytes)

    if b_pad != B or n_pad != N:
        pad = ((0, b_pad - B), (0, n_pad - N))
        # Zero padding is exact: err == 0 -> logcosh == 0 -> contributes 0.
        y_pred = jnp.pad(y_pred, pad)
        y_true = jnp.pad(y_true, pad)

    kernel = functools.partial(
        _logcosh_kernel, factor=float(factor), inv_n=1.0 / float(N)
    )

    out = pl.pallas_call(
        kernel,
        out_shape=jax.ShapeDtypeStruct((b_pad, 1), out_dtype),
        grid_spec=pltpu.PrefetchScalarGridSpec(
            num_scalar_prefetch=0,
            grid=(gb, gn),
            in_specs=[
                pl.BlockSpec((tb, tn), lambda i, j: (i, j)),
                pl.BlockSpec((tb, tn), lambda i, j: (i, j)),
            ],
            # Same output block across the feature (reduction) axis -> resident
            # accumulator pattern; written once at the last feature tile.
            out_specs=pl.BlockSpec((tb, 1), lambda i, j: (i, 0)),
            scratch_shapes=[pltpu.VMEM((tb, 1), jnp.float32)],
        ),
        compiler_params=pltpu.CompilerParams(
            dimension_semantics=("parallel", "arbitrary"),
            vmem_limit_bytes=32 * 1024 * 1024,
        ),
    )(y_pred, y_true)

    # TODO(synk): for tiny N (< 128) lane utilisation is bounded by the data
    # layout; row-packing (B, N) -> (B//k, k*N) with a segmented reduce would
    # recover it but is not needed for correctness.
    return out[:B, 0]  # (B,), matching torch.mean(..., axis=1)


def _reference(y_pred, y_true, factor):
    err = y_true.astype(jnp.float32) - y_pred.astype(jnp.float32)
    return jnp.mean(jnp.log(jnp.cosh(err)) * (1.0 + factor * jnp.abs(err)), axis=1)


if __name__ == "__main__":
    key = jax.random.PRNGKey(0)
    factor = 1.5  # LossFunctionLogCosh default

    # --- case 1: small shape typical of the module's usage (single block) ---
    k1, k2, k3, k4, k5, k6 = jax.random.split(key, 6)
    B, N = 8, 32
    y_pred = jax.random.normal(k1, (B, N), dtype=jnp.float32)
    y_true = jax.random.normal(k2, (B, N), dtype=jnp.float32)
    loss = logcosh_loss(y_pred, y_true, factor=factor)
    jax.block_until_ready(loss)
    ref = _reference(y_pred, y_true, factor)
    assert loss.shape == (B,)
    assert jnp.allclose(loss, ref, rtol=1e-5, atol=1e-5)

    # --- case 2: exercise the tiled / padded path (batch + feature grid) ---
    B2, N2 = 20, 300
    y_pred2 = jax.random.normal(k3, (B2, N2), dtype=jnp.float32)
    y_true2 = jax.random.normal(k4, (B2, N2), dtype=jnp.float32)
    loss2 = logcosh_loss(y_pred2, y_true2, factor=factor,
                         max_feature_tile=128, max_block_bytes=4096)
    jax.block_until_ready(loss2)
    ref2 = _reference(y_pred2, y_true2, factor)
    assert loss2.shape == (B2,)
    assert jnp.allclose(loss2, ref2, rtol=1e-5, atol=1e-5)

    # --- case 3: bf16 inputs (f32 in-kernel accumulation, bf16 output) ---
    B3, N3 = 16, 48
    y_pred3 = jax.random.normal(k5, (B3, N3), dtype=jnp.bfloat16)
    y_true3 = jax.random.normal(k6, (B3, N3), dtype=jnp.bfloat16)
    loss3 = logcosh_loss(y_pred3, y_true3, factor=factor)
    jax.block_until_ready(loss3)
    ref3 = _reference(y_pred3, y_true3, factor)
    assert loss3.shape == (B3,)
    assert jnp.allclose(loss3.astype(jnp.float32), ref3, rtol=2e-2, atol=2e-2)

    print("KERNEL_OK")
</pallas_src>

<mosaic_0001>
module attributes {stable_mosaic.version = 11 : i64} {
  func.func @_logcosh_kernel(%arg0: i32, %arg1: i32, %arg2: memref<8x32xf32, #tpu.memory_space<vmem>>, %arg3: memref<8x32xf32, #tpu.memory_space<vmem>>, %arg4: memref<8x1xf32, #tpu.memory_space<vmem>>, %arg5: memref<8x1xf32, #tpu.memory_space<vmem>>) attributes {dimension_semantics = [#tpu.dimension_semantics<parallel>, #tpu.dimension_semantics<arbitrary>], iteration_bounds = array<i64: 1, 1>, scalar_prefetch = 0 : i64, scratch_operands = 1 : i64, tpu.core_type = #tpu.core_type<tc>, window_params = [{transform_indices = @transform_0, window_bounds = array<i64: 8, 32>}, {transform_indices = @transform_1, window_bounds = array<i64: 8, 32>}, {transform_indices = @transform_2, window_bounds = array<i64: 8, 1>}]} {
    %c0_i32 = arith.constant 0 : i32
    %0 = arith.cmpi eq, %arg1, %c0_i32 : i32
    %1 = arith.extui %0 : i1 to i32
    %c0_i32_0 = arith.constant 0 : i32
    %2 = arith.cmpi ne, %1, %c0_i32_0 : i32
    scf.if %2 {
      %cst_14 = arith.constant 0.000000e+00 : f32
      %27 = vector.broadcast %cst_14 : f32 to vector<8x1xf32>
      %c0_15 = arith.constant 0 : index
      %c0_16 = arith.constant 0 : index
      %28 = vector.load %arg5[%c0_15, %c0_16] : memref<8x1xf32, #tpu.memory_space<vmem>>, vector<8x1xf32>
      tpu.vector_store %arg5[%c0_15, %c0_16], %27 {strides = array<i32>} : memref<8x1xf32, #tpu.memory_space<vmem>>, vector<8x1xf32>,
    } else {
    }
    %c0 = arith.constant 0 : index
    %c0_1 = arith.constant 0 : index
    %3 = vector.load %arg3[%c0, %c0_1] : memref<8x32xf32, #tpu.memory_space<vmem>>, vector<8x32xf32>
    %c0_2 = arith.constant 0 : index
    %c0_3 = arith.constant 0 : index
    %4 = vector.load %arg2[%c0_2, %c0_3] : memref<8x32xf32, #tpu.memory_space<vmem>>, vector<8x32xf32>
    %5 = arith.subf %3, %4 : vector<8x32xf32>
    %6 = math.absf %5 : vector<8x32xf32>
    %cst = arith.constant -2.000000e+00 : f32
    %7 = vector.broadcast %cst : f32 to vector<8x32xf32>
    %8 = arith.mulf %7, %6 : vector<8x32xf32>
    %9 = math.exp %8 : vector<8x32xf32>
    %10 = math.log1p %9 : vector<8x32xf32>
    %11 = arith.addf %6, %10 : vector<8x32xf32>
    %cst_4 = arith.constant 0.693147182 : f32
    %12 = vector.broadcast %cst_4 : f32 to vector<8x32xf32>
    %13 = arith.subf %11, %12 : vector<8x32xf32>
    %cst_5 = arith.constant 1.500000e+00 : f32
    %14 = vector.broadcast %cst_5 : f32 to vector<8x32xf32>
    %15 = arith.mulf %14, %6 : vector<8x32xf32>
    %cst_6 = arith.constant 1.000000e+00 : f32
    %16 = vector.broadcast %cst_6 : f32 to vector<8x32xf32>
    %17 = arith.addf %16, %15 : vector<8x32xf32>
    %18 = arith.mulf %13, %17 : vector<8x32xf32>
    %c0_7 = arith.constant 0 : index
    %c0_8 = arith.constant 0 : index
    %19 = vector.load %arg5[%c0_7, %c0_8] : memref<8x1xf32, #tpu.memory_space<vmem>>, vector<8x1xf32>
    %cst_9 = arith.constant dense<0.000000e+00> : vector<8xf32>
    %20 = vector.multi_reduction <add>, %18, %cst_9 [1] : vector<8x32xf32> to vector<8xf32>
    %21 = vector.shape_cast %20 : vector<8xf32> to vector<8x1xf32>
    %22 = arith.addf %19, %21 : vector<8x1xf32>
    %c0_10 = arith.constant 0 : index
    %c0_11 = arith.constant 0 : index
    %23 = vector.load %arg5[%c0_10, %c0_11] : memref<8x1xf32, #tpu.memory_space<vmem>>, vector<8x1xf32>
    tpu.vector_store %arg5[%c0_10, %c0_11], %22 {strides = array<i32>} : memref<8x1xf32, #tpu.memory_space<vmem>>, vector<8x1xf32>,
    %c0_i32_12 = arith.constant 0 : i32
    %24 = arith.cmpi eq, %arg1, %c0_i32_12 : i32
    %25 = arith.extui %24 : i1 to i32
    %c0_i32_13 = arith.constant 0 : i32
    %26 = arith.cmpi ne, %25, %c0_i32_13 : i32
    scf.if %26 {
      %c0_14 = arith.constant 0 : index
      %c0_15 = arith.constant 0 : index
      %27 = vector.load %arg5[%c0_14, %c0_15] : memref<8x1xf32, #tpu.memory_space<vmem>>, vector<8x1xf32>
      %cst_16 = arith.constant 3.125000e-02 : f32
      %28 = vector.broadcast %cst_16 : f32 to vector<8x1xf32>
      %29 = arith.mulf %27, %28 : vector<8x1xf32>
      %c0_17 = arith.constant 0 : index
      %c0_18 = arith.constant 0 : index
      %30 = vector.load %arg4[%c0_17, %c0_18] : memref<8x1xf32, #tpu.memory_space<vmem>>, vector<8x1xf32>
      tpu.vector_store %arg4[%c0_17, %c0_18], %29 {strides = array<i32>} : memref<8x1xf32, #tpu.memory_space<vmem>>, vector<8x1xf32>,
    } else {
    }
    return
  }
  func.func @transform_0(%arg0: i32, %arg1: i32) -> (i32, i32) {
    %c0_i32 = arith.constant 0 : i32
    return %arg0, %arg1 : i32, i32
  }
  func.func @transform_1(%arg0: i32, %arg1: i32) -> (i32, i32) {
    %c0_i32 = arith.constant 0 : i32
    return %arg0, %arg1 : i32, i32
  }
  func.func @transform_2(%arg0: i32, %arg1: i32) -> (i32, i32) {
    %c0_i32 = arith.constant 0 : i32
    %c0_i32_0 = arith.constant 0 : i32
    return %arg0, %c0_i32 : i32, i32
  }
}

</mosaic_0001>

<llo_original>
// kernel: tpu_custom_call.1
$region0: #{tpu_custom_call.1}
  #allocation0 [shape = 'u32[]', space=smem, size = 0x4, offset = 0x4, fixed_abs, tag = 'smem constant byte address 0x4 - core index']
  #allocation1 [shape = 'u32[72,128]{1,0:T(1,128)}', space=vmem, size = 0x9000, scoped, tag = 'internal scratch']
  #allocation2 [shape = 'f32[8,1]{1,0:T(8,128)}', space=vmem, size = 0x1000, scoped, tag = 'scratch operand']
  %s0 = inlined_call_operand.hbm [shape: f32[8,32], index: 0, kind: input, shape index: {}]
  %s1 = inlined_call_operand.hbm [shape: f32[8,32], index: 1, kind: input, shape index: {}]
  %s2 = inlined_call_operand.vmem [shape: f32[8,1], index: 2, kind: output, shape index: {}]
  %s3 = sld [smem:[#allocation0]]
  $region34: #{tpu_custom_call.1} parent=0
    _
  %s5 = ssub.s32 1, %s3
  %s6 = scalar_select 0, %s5, %s3
  $region1: #{tpu_custom_call.1} parent=0
    #allocation3 [shape = 'u8[4096]{0}', space=vmem, size = 0x1000, scoped, tag = 'input window, operand 0, single buffered']
    #allocation4 [shape = 's32[1]{0}', space=sflag, size = 0x4, scoped, tag = 'scoped memory for tpu_custom_call.1']
    #allocation5 [shape = 'u8[4096]{0}', space=vmem, size = 0x1000, scoped, tag = 'input window, operand 1, single buffered']
    #allocation6 [shape = 's32[1]{0}', space=sflag, size = 0x4, scoped, tag = 'scoped memory for tpu_custom_call.1']
    %7 = vsyncpa [#allocation4], 0
    %8 = vsyncpa [#allocation6], 0
    // Predicated region
    $region2: #{tpu_custom_call.1} parent=1 // pred_check
      _
    $region3: #{tpu_custom_call.1} parent=1 // pred_check_branch
      %10 = sbr.rel (0) target = $region5
    $region4: #{tpu_custom_call.1} parent=1 // pred_region
      %12 = vsyncadd [#allocation4], 0
      %s14 = sshll.u32 %s0, 4
      %s15 = int_to_ptr.hbm [resolvable:$true] %s14
      %s16 = sshll.u32 [#allocation3], 4
      %s17 = int_to_ptr.vmem [resolvable:$true] %s16
      %19 = dma.hbm_to_vmem [thread:$0]  %s15, 128, %s17, [#allocation4]
    $region5: #{tpu_custom_call.1} parent=1 // pred_fallthru
      _
    // Predicated region
    $region6: #{tpu_custom_call.1} parent=1 // pred_check
      _
    $region7: #{tpu_custom_call.1} parent=1 // pred_check_branch
      %21 = sbr.rel (0) target = $region9
    $region8: #{tpu_custom_call.1} parent=1 // pred_region
      %23 = vsyncadd [#allocation6], 0
      %s25 = sshll.u32 %s1, 4
      %s26 = int_to_ptr.hbm [resolvable:$true] %s25
      %s27 = sshll.u32 [#allocation5], 4
      %s28 = int_to_ptr.vmem [resolvable:$true] %s27
      %30 = dma.hbm_to_vmem [thread:$0]  %s26, 128, %s28, [#allocation6]
    $region9: #{tpu_custom_call.1} parent=1 // pred_fallthru
      _
    // Predicated region
    $region10: #{tpu_custom_call.1} parent=1 // pred_check
      _
    $region11: #{tpu_custom_call.1} parent=1 // pred_check_branch
      %32 = sbr.rel (0) target = $region13
    $region12: #{tpu_custom_call.1} parent=1 // pred_region
      %34 = dma.done [#allocation4], 128
    $region13: #{tpu_custom_call.1} parent=1 // pred_fallthru
      _
    // Predicated region
    $region14: #{tpu_custom_call.1} parent=1 // pred_check
      _
    $region15: #{tpu_custom_call.1} parent=1 // pred_check_branch
      %36 = sbr.rel (0) target = $region17
    $region16: #{tpu_custom_call.1} parent=1 // pred_region
      %38 = dma.done [#allocation6], 128
    $region17: #{tpu_custom_call.1} parent=1 // pred_fallthru
      _
    %p39 = scmp.eq.s32.totalorder 0, 0
    // Predicated region
    $region18: #{tpu_custom_call.1} parent=1 // pred_check
      %p40 = pneg %p39
    $region19: #{tpu_custom_call.1} parent=1 // pred_check_branch
      %42 = sbr.rel (%p40) target = $region21
    $region20: #{tpu_custom_call.1} parent=1 // pred_region
      %vm43 = vcmask 7168
      %44 = vst.msk [vmem:[#allocation2] sm:$0xff] %vm43, 0.0
    $region21: #{tpu_custom_call.1} parent=1 // pred_fallthru
      _
    %v45 = vld [vmem:[#allocation5] sm:$0xff]
    %v46 = vld [vmem:[#allocation3] sm:$0xff]
    %v47 = vsub.f32 %v45, %v46
    %v48 = vand.u32 2147483647, %v47
    %v49 = vmul.f32 %v48, -2.0
    %v50 = vmul.f32 %v49, 1.442695
    %v51 = vpow.pop %v50
    %v52 = vadd.f32 %v51, 1.0
    %v53 = vlog2.pop %v52
    %v54 = vmul.f32 %v53, 0.6931472
    %v55 = vmul.f32 -0.5, %v51
    %v56 = vadd.f32 %v55, 1.0
    %v57 = vmul.f32 %v56, %v51
    %v58 = vand.u32 2147483647, %v51
    %vm59 = vcmp.lt.f32.partialorder %v58, 0.0004427343
    %v60 = vsel %vm59, %v57, %v54
    %v61 = vadd.f32 %v48, %v60
    %v62 = vsub.f32 %v61, 0.6931472
    %v63 = vmul.f32 %v48, 1.5
    %v64 = vadd.f32 %v63, 1.0
    %v65 = vmul.f32 %v62, %v64
    %v66 = vld [vmem:[#allocation2] sm:$0xff]
    %vm67 = vcmask 261120
    %v68 = vsel %vm67, %v65, 0.0
    %69 = vadd.xlane.f32.xlu0 %v68
    %v70 = vpop.xlane.xlu0 %69
    %v71 = vadd.f32 %v66, %v70
    %vm72 = vcmask 7168
    %73 = vst.msk [vmem:[#allocation2] sm:$0xff] %vm72, %v71
    // Predicated region
    $region22: #{tpu_custom_call.1} parent=1 // pred_check
      %p74 = pneg %p39
    $region23: #{tpu_custom_call.1} parent=1 // pred_check_branch
      %76 = sbr.rel (%p74) target = $region25
    $region24: #{tpu_custom_call.1} parent=1 // pred_region
      %v77 = vld [vmem:[#allocation2] sm:$0xff]
      %v78 = vmul.f32 %v77, 0.03125
      %79 = vst.msk [vmem:[%s2] sm:$0xff] %vm72, %v78
    $region25: #{tpu_custom_call.1} parent=1 // pred_fallthru
      _
    // Predicated region
    $region26: #{tpu_custom_call.1} parent=1 // pred_check
      _
    $region27: #{tpu_custom_call.1} parent=1 // pred_check_branch
      %81 = sbr.rel (0) target = $region29
    $region28: #{tpu_custom_call.1} parent=1 // pred_region
      _
    $region29: #{tpu_custom_call.1} parent=1 // pred_fallthru
      _
    // Predicated region
    $region30: #{tpu_custom_call.1} parent=1 // pred_check
      _
    $region31: #{tpu_custom_call.1} parent=1 // pred_check_branch
      %83 = sbr.rel (0) target = $region33
    $region32: #{tpu_custom_call.1} parent=1 // pred_region
      _
    $region33: #{tpu_custom_call.1} parent=1 // pred_fallthru
      _
    %84 = vsyncpa [#allocation4], 1
    %85 = vsyncpa [#allocation6], 1

</llo_original>
